<compile_context>
chip_gen: v5e
topology: v5e:2x2
jax: 0.10.0
libtpu: 0.0.40
codegen_flags: <defaults>
</compile_context>

<pallas_src>
import functools
import math

import numpy as np
import jax
import jax.numpy as jnp
from jax.experimental import pallas as pl
from jax.experimental.pallas import tpu as pltpu


# ---------------------------------------------------------------------------
# Host-side (one-time) parameter preparation
# ---------------------------------------------------------------------------

def get_rotary_matrix(context_window: int, embedding_dim: int) -> np.ndarray:
    """Numpy port of the PyTorch get_rotary_matrix (used only by the reference)."""
    R = np.zeros((context_window, embedding_dim, embedding_dim), dtype=np.float32)
    for position in range(context_window):
        for i in range(embedding_dim // 2):
            theta = 10000.0 ** (-2.0 * (i - 1) / embedding_dim)
            m_theta = position * theta
            R[position, 2 * i, 2 * i] = np.cos(m_theta)
            R[position, 2 * i, 2 * i + 1] = -np.sin(m_theta)
            R[position, 2 * i + 1, 2 * i] = np.sin(m_theta)
            R[position, 2 * i + 1, 2 * i + 1] = np.cos(m_theta)
    return R


def get_rope_tables(context_window: int, embedding_dim: int):
    """(context, d) cos/sin tables, pairwise duplicated, with the exact same
    (i - 1) theta formula as get_rotary_matrix (bit-compatible values)."""
    d = embedding_dim
    cos = np.zeros((context_window, d), dtype=np.float32)
    sin = np.zeros((context_window, d), dtype=np.float32)
    for position in range(context_window):
        for i in range(d // 2):
            theta = 10000.0 ** (-2.0 * (i - 1) / d)
            m_theta = position * theta
            c, s = np.cos(m_theta), np.sin(m_theta)
            cos[position, 2 * i] = c
            cos[position, 2 * i + 1] = c
            sin[position, 2 * i] = s
            sin[position, 2 * i + 1] = s
    return cos, sin


def prepare_fused_weight(w_q, w_k, w_v) -> jnp.ndarray:
    """Fuse q/k/v projections plus RoPE's signed even/odd swap into (d, 5d).

    nn.Linear computes y = x @ W.T, so pre-transposed (in, out) blocks are
    stored; swap() permutes output columns so that
        (x @ swap(Wq^T))[:, 2i]   =  q[:, 2i+1]
        (x @ swap(Wq^T))[:, 2i+1] = -q[:, 2i]
    i.e. the pair-rotation half of RoPE rides the same MXU pass as the
    projections; the kernel then only needs elementwise cos/sin math.
    """
    wq_t = np.asarray(w_q, dtype=np.float32).T   # (in, out)
    wk_t = np.asarray(w_k, dtype=np.float32).T
    wv_t = np.asarray(w_v, dtype=np.float32).T

    def signed_swap(w_t):
        sw = np.empty_like(w_t)
        sw[:, 0::2] = w_t[:, 1::2]      # output 2i   <-  q[2i+1]
        sw[:, 1::2] = -w_t[:, 0::2]     # output 2i+1 <- -q[2i]
        return sw

    fused = np.concatenate(
        [wq_t, wk_t, wv_t, signed_swap(wq_t), signed_swap(wk_t)], axis=1)
    return jnp.asarray(fused)


# ---------------------------------------------------------------------------
# Kernel A: fused QKV projection + elementwise RoPE (+ 1/sqrt(d) folded into q)
# ---------------------------------------------------------------------------

def _qkv_rope_kernel(x_ref, w_ref, cos_ref, sin_ref, q_ref, k_ref, v_ref, *,
                     d_model: int):
    d = d_model
    x = x_ref[...]                                          # (tm, d)
    # One MXU pass, N = 5d: q | k | v | q_swapped | k_swapped.  Weights are
    # pre-transposed on the host, so no `.T` / XLU transpose inside the kernel.
    fused = jnp.dot(x, w_ref[...], preferred_element_type=jnp.float32)

    q = fused[:, 0 * d:1 * d]
    k = fused[:, 1 * d:2 * d]
    v = fused[:, 2 * d:3 * d]
    q_sw = fused[:, 3 * d:4 * d]                            # (q[2i+1], -q[2i])
    k_sw = fused[:, 4 * d:5 * d]

    cos = cos_ref[...]                                      # (tm, d)
    sin = sin_ref[...]

    # Elementwise RoPE (pure VPU work).  Attention scale folded into q so the
    # (tq, tkv) score tile never needs rescaling (m*d muls instead of m*m).
    scale = 1.0 / math.sqrt(d)
    q_ref[...] = (scale * (q * cos + q_sw * sin)).astype(q_ref.dtype)
    k_ref[...] = (k * cos + k_sw * sin).astype(k_ref.dtype)
    v_ref[...] = v.astype(v_ref.dtype)


def _qkv_rope(x, w_fused, cos, sin, *, block_m):
    b, m, d = x.shape
    n_m = m // block_m
    kernel = functools.partial(_qkv_rope_kernel, d_model=d)
    out_sds = jax.ShapeDtypeStruct((b, m, d), jnp.float32)
    return pl.pallas_call(
        kernel,
        out_shape=(out_sds, out_sds, out_sds),
        grid=(b, n_m),
        in_specs=[
            pl.BlockSpec((None, block_m, d), lambda bi, mi: (bi, mi, 0)),
            pl.BlockSpec((d, 5 * d), lambda bi, mi: (0, 0)),
            pl.BlockSpec((block_m, d), lambda bi, mi: (mi, 0)),
            pl.BlockSpec((block_m, d), lambda bi, mi: (mi, 0)),
        ],
        out_specs=(
            pl.BlockSpec((None, block_m, d), lambda bi, mi: (bi, mi, 0)),
            pl.BlockSpec((None, block_m, d), lambda bi, mi: (bi, mi, 0)),
            pl.BlockSpec((None, block_m, d), lambda bi, mi: (bi, mi, 0)),
        ),
        compiler_params=pltpu.CompilerParams(
            dimension_semantics=("parallel", "parallel")),
    )(x, w_fused, cos, sin)


# ---------------------------------------------------------------------------
# Kernel B: causal flash attention (online softmax, causal kv-tile skipping)
# ---------------------------------------------------------------------------

def _flash_attn_kernel(q_ref, k_ref, v_ref, o_ref, m_scr, l_scr, acc_scr, *,
                       block_q: int, block_kv: int):
    qi = pl.program_id(1)
    ki = pl.program_id(2)

    @pl.when(ki == 0)
    def _init():
        m_scr[...] = jnp.full(m_scr.shape, -jnp.inf, dtype=jnp.float32)
        l_scr[...] = jnp.zeros(l_scr.shape, dtype=jnp.float32)
        acc_scr[...] = jnp.zeros(acc_scr.shape, dtype=jnp.float32)

    # Skip kv tiles lying entirely above the causal diagonal (~2x less work).
    @pl.when(ki * block_kv < (qi + 1) * block_q)
    def _update():
        q = q_ref[...]                                      # (tq, d), pre-scaled
        k = k_ref[...]                                      # (tkv, d)
        # Contract the feature dims directly; no explicit k.T materialized.
        s = jax.lax.dot_general(
            q, k, (((1,), (1,)), ((), ())),
            preferred_element_type=jnp.float32)             # (tq, tkv)

        row = qi * block_q + jax.lax.broadcasted_iota(
            jnp.int32, (block_q, block_kv), 0)
        col = ki * block_kv + jax.lax.broadcasted_iota(
            jnp.int32, (block_q, block_kv), 1)
        s = jnp.where(col <= row, s, -jnp.inf)

        m_prev = m_scr[...]
        m_new = jnp.maximum(m_prev, jnp.max(s, axis=-1, keepdims=True))
        alpha = jnp.exp(m_prev - m_new)
        p = jnp.exp(s - m_new)
        l_scr[...] = alpha * l_scr[...] + jnp.sum(p, axis=-1, keepdims=True)
        acc_scr[...] = alpha * acc_scr[...] + jnp.dot(
            p, v_ref[...], preferred_element_type=jnp.float32)
        m_scr[...] = m_new

    @pl.when(ki == pl.num_programs(2) - 1)
    def _finalize():
        # Causal: every query row sees >= 1 unmasked key, so l > 0 (no NaN).
        o_ref[...] = (acc_scr[...] *
                      pl.reciprocal(l_scr[...], approx=True)).astype(o_ref.dtype)


def _flash_attention(q, k, v, *, block_q, block_kv):
    b, m, d = q.shape
    n_q = m // block_q
    n_kv = m // block_kv
    kernel = functools.partial(_flash_attn_kernel, block_q=block_q,
                               block_kv=block_kv)
    return pl.pallas_call(
        kernel,
        out_shape=jax.ShapeDtypeStruct((b, m, d), jnp.float32),
        grid=(b, n_q, n_kv),
        in_specs=[
            pl.BlockSpec((None, block_q, d), lambda bi, qi, ki: (bi, qi, 0)),
            pl.BlockSpec((None, block_kv, d), lambda bi, qi, ki: (bi, ki, 0)),
            pl.BlockSpec((None, block_kv, d), lambda bi, qi, ki: (bi, ki, 0)),
        ],
        out_specs=pl.BlockSpec((None, block_q, d),
                               lambda bi, qi, ki: (bi, qi, 0)),
        scratch_shapes=[
            pltpu.VMEM((block_q, 1), jnp.float32),    # running max
            pltpu.VMEM((block_q, 1), jnp.float32),    # running sum
            pltpu.VMEM((block_q, d), jnp.float32),    # output accumulator
        ],
        compiler_params=pltpu.CompilerParams(
            dimension_semantics=("parallel", "parallel", "arbitrary")),
    )(q, k, v)


# ---------------------------------------------------------------------------
# Top-level forward
# ---------------------------------------------------------------------------

def _pick_block(n: int, target: int) -> int:
    """Largest multiple-of-8 divisor of n that is <= target (or n itself)."""
    if n <= target:
        return n
    blk = target - (target % 8)
    while blk >= 8:
        if n % blk == 0:
            return blk
        blk -= 8
    return n


@jax.jit
def rope_attention_head(x, w_fused, cos_tab, sin_tab):
    """x: (b, m, d) float32.  Returns causal RoPE attention output, (b, m, d)."""
    b, m, d = x.shape
    # Tile targets: modest row tiles keep double-buffered blocks well inside the
    # scoped-VMEM defaults (and v7x's 64 MiB physical VMEM); kv is the trailing
    # "arbitrary" reduction axis, batch / q-tile axes are "parallel" so both
    # v7x TensorCores (megacore) get work.
    block_m = _pick_block(m, 256)
    block_q = _pick_block(m, 128)
    block_kv = _pick_block(m, 512)
    q_rot, k_rot, v = _qkv_rope(x, w_fused, cos_tab[:m], sin_tab[:m],
                                block_m=block_m)
    return _flash_attention(q_rot, k_rot, v, block_q=block_q, block_kv=block_kv)


# ---------------------------------------------------------------------------
# Pure-JAX reference (mirrors the PyTorch forward, no dropout)
# ---------------------------------------------------------------------------

def _reference(x, w_q, w_k, w_v, R_full):
    hi = jax.lax.Precision.HIGHEST
    b, m, d = x.shape
    R = R_full[:m]
    q = jnp.einsum('bmd,ed->bme', x, w_q, precision=hi)
    k = jnp.einsum('bmd,ed->bme', x, w_k, precision=hi)
    v = jnp.einsum('bmd,ed->bme', x, w_v, precision=hi)
    q_rot = jnp.einsum('bpd,pde->bpe', q, R, precision=hi)
    k_rot = jnp.einsum('bpd,pde->bpe', k, R, precision=hi)
    scores = jnp.einsum('bqd,bkd->bqk', q_rot, k_rot,
                        precision=hi) / jnp.sqrt(jnp.float32(d))
    mask = jnp.tril(jnp.ones((m, m), dtype=bool))
    scores = jnp.where(mask[None], scores, -jnp.inf)
    attn = jax.nn.softmax(scores, axis=-1)
    return jnp.einsum('bqk,bkd->bqd', attn, v, precision=hi)


if __name__ == "__main__":
    # config: d_model=32, context_window=16; input: batch=2, seq=8
    d_model = 32
    context_window = 16
    batch = 2
    seq = 8

    key = jax.random.PRNGKey(0)
    kx, kq, kk, kv = jax.random.split(key, 4)

    x = jax.random.normal(kx, (batch, seq, d_model), dtype=jnp.float32)

    # nn.Linear default init: U(-1/sqrt(in_features), 1/sqrt(in_features))
    bound = 1.0 / np.sqrt(d_model)
    w_q = jax.random.uniform(kq, (d_model, d_model), jnp.float32, -bound, bound)
    w_k = jax.random.uniform(kk, (d_model, d_model), jnp.float32, -bound, bound)
    w_v = jax.random.uniform(kv, (d_model, d_model), jnp.float32, -bound, bound)

    # One-time host prep (per model, not per forward).
    w_fused = prepare_fused_weight(w_q, w_k, w_v)
    cos_np, sin_np = get_rope_tables(context_window, d_model)
    cos_tab = jnp.asarray(cos_np)
    sin_tab = jnp.asarray(sin_np)

    out = rope_attention_head(x, w_fused, cos_tab, sin_tab)
    out = jax.block_until_ready(out)

    # Reference uses the original (m, d, d) rotary matrices.
    R_full = jnp.asarray(get_rotary_matrix(context_window, d_model))
    ref = _reference(x, w_q, w_k, w_v, R_full)

    # The only intended deviation from the f32 reference is the EUP approximate
    # reciprocal used for the softmax denominator (plus f32 reassociation).
    np.testing.assert_allclose(np.asarray(out), np.asarray(ref),
                               rtol=5e-3, atol=5e-3)

    print("KERNEL_OK")
</pallas_src>

<mosaic_0001>
module attributes {stable_mosaic.version = 11 : i64} {
  func.func @_qkv_rope_kernel(%arg0: i32, %arg1: i32, %arg2: memref<1x8x32xf32, #tpu.memory_space<vmem>>, %arg3: memref<32x160xf32, #tpu.memory_space<vmem>>, %arg4: memref<8x32xf32, #tpu.memory_space<vmem>>, %arg5: memref<8x32xf32, #tpu.memory_space<vmem>>, %arg6: memref<1x8x32xf32, #tpu.memory_space<vmem>>, %arg7: memref<1x8x32xf32, #tpu.memory_space<vmem>>, %arg8: memref<1x8x32xf32, #tpu.memory_space<vmem>>) attributes {dimension_semantics = [#tpu.dimension_semantics<parallel>, #tpu.dimension_semantics<parallel>], iteration_bounds = array<i64: 2, 1>, scalar_prefetch = 0 : i64, scratch_operands = 0 : i64, tpu.core_type = #tpu.core_type<tc>, window_params = [{transform_indices = @transform_0, window_bounds = array<i64: 1, 8, 32>}, {pipeline_mode = #tpu.pipeline_mode<synchronous>, transform_indices = @transform_1, window_bounds = array<i64: 32, 160>}, {transform_indices = @transform_2, window_bounds = array<i64: 8, 32>}, {transform_indices = @transform_3, window_bounds = array<i64: 8, 32>}, {transform_indices = @transform_4, window_bounds = array<i64: 1, 8, 32>}, {transform_indices = @transform_5, window_bounds = array<i64: 1, 8, 32>}, {transform_indices = @transform_6, window_bounds = array<i64: 1, 8, 32>}]} {
    %c0 = arith.constant 0 : index
    %c0_0 = arith.constant 0 : index
    %c0_1 = arith.constant 0 : index
    %0 = vector.load %arg2[%c0, %c0_0, %c0_1] : memref<1x8x32xf32, #tpu.memory_space<vmem>>, vector<1x8x32xf32>
    %1 = vector.shape_cast %0 : vector<1x8x32xf32> to vector<8x32xf32>
    %c0_2 = arith.constant 0 : index
    %c0_3 = arith.constant 0 : index
    %2 = vector.load %arg3[%c0_2, %c0_3] : memref<32x160xf32, #tpu.memory_space<vmem>>, vector<32x160xf32>
    %cst = arith.constant dense<0.000000e+00> : vector<8x160xf32>
    %3 = tpu.matmul %1, %2, %cst {dimension_numbers = #tpu.dot_dimension_numbers<[1], [0], [0], [1], [0, 0, 1, 1], [], []>} : vector<8x32xf32>, vector<32x160xf32>, vector<8x160xf32> -> vector<8x160xf32>
    %4 = vector.extract_strided_slice %3 {offsets = [0, 0], sizes = [8, 32], strides = [1, 1]} : vector<8x160xf32> to vector<8x32xf32>
    %5 = vector.extract_strided_slice %3 {offsets = [0, 32], sizes = [8, 32], strides = [1, 1]} : vector<8x160xf32> to vector<8x32xf32>
    %6 = vector.extract_strided_slice %3 {offsets = [0, 64], sizes = [8, 32], strides = [1, 1]} : vector<8x160xf32> to vector<8x32xf32>
    %7 = vector.extract_strided_slice %3 {offsets = [0, 96], sizes = [8, 32], strides = [1, 1]} : vector<8x160xf32> to vector<8x32xf32>
    %8 = vector.extract_strided_slice %3 {offsets = [0, 128], sizes = [8, 32], strides = [1, 1]} : vector<8x160xf32> to vector<8x32xf32>
    %c0_4 = arith.constant 0 : index
    %c0_5 = arith.constant 0 : index
    %9 = vector.load %arg4[%c0_4, %c0_5] : memref<8x32xf32, #tpu.memory_space<vmem>>, vector<8x32xf32>
    %c0_6 = arith.constant 0 : index
    %c0_7 = arith.constant 0 : index
    %10 = vector.load %arg5[%c0_6, %c0_7] : memref<8x32xf32, #tpu.memory_space<vmem>>, vector<8x32xf32>
    %11 = arith.mulf %4, %9 : vector<8x32xf32>
    %12 = arith.mulf %7, %10 : vector<8x32xf32>
    %13 = arith.addf %11, %12 : vector<8x32xf32>
    %cst_8 = arith.constant 0.176776692 : f32
    %14 = vector.broadcast %cst_8 : f32 to vector<8x32xf32>
    %15 = arith.mulf %14, %13 : vector<8x32xf32>
    %c0_9 = arith.constant 0 : index
    %c0_10 = arith.constant 0 : index
    %c0_11 = arith.constant 0 : index
    %16 = vector.load %arg6[%c0_9, %c0_10, %c0_11] : memref<1x8x32xf32, #tpu.memory_space<vmem>>, vector<1x8x32xf32>
    %17 = vector.shape_cast %16 : vector<1x8x32xf32> to vector<8x32xf32>
    %18 = vector.shape_cast %15 : vector<8x32xf32> to vector<1x8x32xf32>
    tpu.vector_store %arg6[%c0_9, %c0_10, %c0_11], %18 {strides = array<i32>} : memref<1x8x32xf32, #tpu.memory_space<vmem>>, vector<1x8x32xf32>,
    %19 = arith.mulf %5, %9 : vector<8x32xf32>
    %20 = arith.mulf %8, %10 : vector<8x32xf32>
    %21 = arith.addf %19, %20 : vector<8x32xf32>
    %c0_12 = arith.constant 0 : index
    %c0_13 = arith.constant 0 : index
    %c0_14 = arith.constant 0 : index
    %22 = vector.load %arg7[%c0_12, %c0_13, %c0_14] : memref<1x8x32xf32, #tpu.memory_space<vmem>>, vector<1x8x32xf32>
    %23 = vector.shape_cast %22 : vector<1x8x32xf32> to vector<8x32xf32>
    %24 = vector.shape_cast %21 : vector<8x32xf32> to vector<1x8x32xf32>
    tpu.vector_store %arg7[%c0_12, %c0_13, %c0_14], %24 {strides = array<i32>} : memref<1x8x32xf32, #tpu.memory_space<vmem>>, vector<1x8x32xf32>,
    %c0_15 = arith.constant 0 : index
    %c0_16 = arith.constant 0 : index
    %c0_17 = arith.constant 0 : index
    %25 = vector.load %arg8[%c0_15, %c0_16, %c0_17] : memref<1x8x32xf32, #tpu.memory_space<vmem>>, vector<1x8x32xf32>
    %26 = vector.shape_cast %25 : vector<1x8x32xf32> to vector<8x32xf32>
    %27 = vector.shape_cast %6 : vector<8x32xf32> to vector<1x8x32xf32>
    tpu.vector_store %arg8[%c0_15, %c0_16, %c0_17], %27 {strides = array<i32>} : memref<1x8x32xf32, #tpu.memory_space<vmem>>, vector<1x8x32xf32>,
    return
  }
  func.func @transform_0(%arg0: i32, %arg1: i32) -> (i32, i32, i32) {
    %c0_i32 = arith.constant 0 : i32
    %c0_i32_0 = arith.constant 0 : i32
    return %arg0, %arg1, %c0_i32 : i32, i32, i32
  }
  func.func @transform_1(%arg0: i32, %arg1: i32) -> (i32, i32) {
    %c0_i32 = arith.constant 0 : i32
    %c0_i32_0 = arith.constant 0 : i32
    %c0_i32_1 = arith.constant 0 : i32
    return %c0_i32, %c0_i32_0 : i32, i32
  }
  func.func @transform_2(%arg0: i32, %arg1: i32) -> (i32, i32) {
    %c0_i32 = arith.constant 0 : i32
    %c0_i32_0 = arith.constant 0 : i32
    return %arg1, %c0_i32 : i32, i32
  }
  func.func @transform_3(%arg0: i32, %arg1: i32) -> (i32, i32) {
    %c0_i32 = arith.constant 0 : i32
    %c0_i32_0 = arith.constant 0 : i32
    return %arg1, %c0_i32 : i32, i32
  }
  func.func @transform_4(%arg0: i32, %arg1: i32) -> (i32, i32, i32) {
    %c0_i32 = arith.constant 0 : i32
    %c0_i32_0 = arith.constant 0 : i32
    return %arg0, %arg1, %c0_i32 : i32, i32, i32
  }
  func.func @transform_5(%arg0: i32, %arg1: i32) -> (i32, i32, i32) {
    %c0_i32 = arith.constant 0 : i32
    %c0_i32_0 = arith.constant 0 : i32
    return %arg0, %arg1, %c0_i32 : i32, i32, i32
  }
  func.func @transform_6(%arg0: i32, %arg1: i32) -> (i32, i32, i32) {
    %c0_i32 = arith.constant 0 : i32
    %c0_i32_0 = arith.constant 0 : i32
    return %arg0, %arg1, %c0_i32 : i32, i32, i32
  }
}

module attributes {stable_mosaic.version = 11 : i64} {
  func.func @_flash_attn_kernel(%arg0: i32, %arg1: i32, %arg2: i32, %arg3: memref<1x8x32xf32, #tpu.memory_space<vmem>>, %arg4: memref<1x8x32xf32, #tpu.memory_space<vmem>>, %arg5: memref<1x8x32xf32, #tpu.memory_space<vmem>>, %arg6: memref<1x8x32xf32, #tpu.memory_space<vmem>>, %arg7: memref<8x1xf32, #tpu.memory_space<vmem>>, %arg8: memref<8x1xf32, #tpu.memory_space<vmem>>, %arg9: memref<8x32xf32, #tpu.memory_space<vmem>>) attributes {dimension_semantics = [#tpu.dimension_semantics<parallel>, #tpu.dimension_semantics<parallel>, #tpu.dimension_semantics<arbitrary>], iteration_bounds = array<i64: 2, 1, 1>, scalar_prefetch = 0 : i64, scratch_operands = 3 : i64, tpu.core_type = #tpu.core_type<tc>, window_params = [{transform_indices = @transform_0, window_bounds = array<i64: 1, 8, 32>}, {transform_indices = @transform_1, window_bounds = array<i64: 1, 8, 32>}, {transform_indices = @transform_2, window_bounds = array<i64: 1, 8, 32>}, {transform_indices = @transform_3, window_bounds = array<i64: 1, 8, 32>}]} {
    %c0_i32 = arith.constant 0 : i32
    %0 = arith.cmpi eq, %arg2, %c0_i32 : i32
    %1 = arith.extui %0 : i1 to i32
    %c0_i32_0 = arith.constant 0 : i32
    %2 = arith.cmpi ne, %1, %c0_i32_0 : i32
    scf.if %2 {
      %cst = arith.constant 0xFF800000 : f32
      %12 = vector.broadcast %cst : f32 to vector<8x1xf32>
      %c0 = arith.constant 0 : index
      %c0_5 = arith.constant 0 : index
      %13 = vector.load %arg7[%c0, %c0_5] : memref<8x1xf32, #tpu.memory_space<vmem>>, vector<8x1xf32>
      tpu.vector_store %arg7[%c0, %c0_5], %12 {strides = array<i32>} : memref<8x1xf32, #tpu.memory_space<vmem>>, vector<8x1xf32>,
      %cst_6 = arith.constant 0.000000e+00 : f32
      %14 = vector.broadcast %cst_6 : f32 to vector<8x1xf32>
      %c0_7 = arith.constant 0 : index
      %c0_8 = arith.constant 0 : index
      %15 = vector.load %arg8[%c0_7, %c0_8] : memref<8x1xf32, #tpu.memory_space<vmem>>, vector<8x1xf32>
      tpu.vector_store %arg8[%c0_7, %c0_8], %14 {strides = array<i32>} : memref<8x1xf32, #tpu.memory_space<vmem>>, vector<8x1xf32>,
      %cst_9 = arith.constant 0.000000e+00 : f32
      %16 = vector.broadcast %cst_9 : f32 to vector<8x32xf32>
      %c0_10 = arith.constant 0 : index
      %c0_11 = arith.constant 0 : index
      %17 = vector.load %arg9[%c0_10, %c0_11] : memref<8x32xf32, #tpu.memory_space<vmem>>, vector<8x32xf32>
      tpu.vector_store %arg9[%c0_10, %c0_11], %16 {strides = array<i32>} : memref<8x32xf32, #tpu.memory_space<vmem>>, vector<8x32xf32>,
    } else {
    }
    %c8_i32 = arith.constant 8 : i32
    %3 = arith.muli %arg2, %c8_i32 : i32
    %c1_i32 = arith.constant 1 : i32
    %4 = arith.addi %arg1, %c1_i32 : i32
    %c8_i32_1 = arith.constant 8 : i32
    %5 = arith.muli %4, %c8_i32_1 : i32
    %6 = arith.cmpi slt, %3, %5 : i32
    %7 = arith.extui %6 : i1 to i32
    %c0_i32_2 = arith.constant 0 : i32
    %8 = arith.cmpi ne, %7, %c0_i32_2 : i32
    scf.if %8 {
      %c0 = arith.constant 0 : index
      %c0_5 = arith.constant 0 : index
      %c0_6 = arith.constant 0 : index
      %12 = vector.load %arg3[%c0, %c0_5, %c0_6] : memref<1x8x32xf32, #tpu.memory_space<vmem>>, vector<1x8x32xf32>
      %13 = vector.shape_cast %12 : vector<1x8x32xf32> to vector<8x32xf32>
      %c0_7 = arith.constant 0 : index
      %c0_8 = arith.constant 0 : index
      %c0_9 = arith.constant 0 : index
      %14 = vector.load %arg4[%c0_7, %c0_8, %c0_9] : memref<1x8x32xf32, #tpu.memory_space<vmem>>, vector<1x8x32xf32>
      %15 = vector.shape_cast %14 : vector<1x8x32xf32> to vector<8x32xf32>
      %cst = arith.constant dense<0.000000e+00> : vector<8x8xf32>
      %16 = tpu.matmul %13, %15, %cst {dimension_numbers = #tpu.dot_dimension_numbers<[1], [1], [0], [0], [0, 0, 1, 0], [], []>} : vector<8x32xf32>, vector<8x32xf32>, vector<8x8xf32> -> vector<8x8xf32>
      %c8_i32_10 = arith.constant 8 : i32
      %17 = arith.muli %arg1, %c8_i32_10 : i32
      %18 = tpu.iota {dimensions = array<i32: 0>} : vector<8x8xi32>
      %19 = vector.broadcast %17 : i32 to vector<8x8xi32>
      %20 = arith.addi %19, %18 : vector<8x8xi32>
      %c8_i32_11 = arith.constant 8 : i32
      %21 = arith.muli %arg2, %c8_i32_11 : i32
      %22 = tpu.iota {dimensions = array<i32: 1>} : vector<8x8xi32>
      %23 = vector.broadcast %21 : i32 to vector<8x8xi32>
      %24 = arith.addi %23, %22 : vector<8x8xi32>
      %25 = arith.cmpi sle, %24, %20 : vector<8x8xi32>
      %cst_12 = arith.constant 0xFF800000 : f32
      %26 = vector.broadcast %cst_12 : f32 to vector<8x8xf32>
      %27 = arith.select %25, %16, %26 : vector<8x8xi1>, vector<8x8xf32>
      %c0_13 = arith.constant 0 : index
      %c0_14 = arith.constant 0 : index
      %28 = vector.load %arg7[%c0_13, %c0_14] : memref<8x1xf32, #tpu.memory_space<vmem>>, vector<8x1xf32>
      %cst_15 = arith.constant dense<0xFF800000> : vector<8xf32>
      %29 = vector.multi_reduction <maximumf>, %27, %cst_15 [1] : vector<8x8xf32> to vector<8xf32>
      %30 = vector.shape_cast %29 : vector<8xf32> to vector<8x1xf32>
      %31 = arith.maximumf %28, %30 : vector<8x1xf32>
      %32 = arith.subf %28, %31 : vector<8x1xf32>
      %33 = math.exp %32 : vector<8x1xf32>
      %34 = vector.broadcast %31 : vector<8x1xf32> to vector<8x8xf32>
      %35 = arith.subf %27, %34 : vector<8x8xf32>
      %36 = math.exp %35 : vector<8x8xf32>
      %c0_16 = arith.constant 0 : index
      %c0_17 = arith.constant 0 : index
      %37 = vector.load %arg8[%c0_16, %c0_17] : memref<8x1xf32, #tpu.memory_space<vmem>>, vector<8x1xf32>
      %38 = arith.mulf %33, %37 : vector<8x1xf32>
      %cst_18 = arith.constant dense<0.000000e+00> : vector<8xf32>
      %39 = vector.multi_reduction <add>, %36, %cst_18 [1] : vector<8x8xf32> to vector<8xf32>
      %40 = vector.shape_cast %39 : vector<8xf32> to vector<8x1xf32>
      %41 = arith.addf %38, %40 : vector<8x1xf32>
      %c0_19 = arith.constant 0 : index
      %c0_20 = arith.constant 0 : index
      %42 = vector.load %arg8[%c0_19, %c0_20] : memref<8x1xf32, #tpu.memory_space<vmem>>, vector<8x1xf32>
      tpu.vector_store %arg8[%c0_19, %c0_20], %41 {strides = array<i32>} : memref<8x1xf32, #tpu.memory_space<vmem>>, vector<8x1xf32>,
      %c0_21 = arith.constant 0 : index
      %c0_22 = arith.constant 0 : index
      %43 = vector.load %arg9[%c0_21, %c0_22] : memref<8x32xf32, #tpu.memory_space<vmem>>, vector<8x32xf32>
      %44 = vector.broadcast %33 : vector<8x1xf32> to vector<8x32xf32>
      %45 = arith.mulf %44, %43 : vector<8x32xf32>
      %c0_23 = arith.constant 0 : index
      %c0_24 = arith.constant 0 : index
      %c0_25 = arith.constant 0 : index
      %46 = vector.load %arg5[%c0_23, %c0_24, %c0_25] : memref<1x8x32xf32, #tpu.memory_space<vmem>>, vector<1x8x32xf32>
      %47 = vector.shape_cast %46 : vector<1x8x32xf32> to vector<8x32xf32>
      %cst_26 = arith.constant dense<0.000000e+00> : vector<8x32xf32>
      %48 = tpu.matmul %36, %47, %cst_26 {dimension_numbers = #tpu.dot_dimension_numbers<[1], [0], [0], [1], [0, 0, 1, 1], [], []>} : vector<8x8xf32>, vector<8x32xf32>, vector<8x32xf32> -> vector<8x32xf32>
      %49 = arith.addf %45, %48 : vector<8x32xf32>
      %c0_27 = arith.constant 0 : index
      %c0_28 = arith.constant 0 : index
      %50 = vector.load %arg9[%c0_27, %c0_28] : memref<8x32xf32, #tpu.memory_space<vmem>>, vector<8x32xf32>
      tpu.vector_store %arg9[%c0_27, %c0_28], %49 {strides = array<i32>} : memref<8x32xf32, #tpu.memory_space<vmem>>, vector<8x32xf32>,
      %c0_29 = arith.constant 0 : index
      %c0_30 = arith.constant 0 : index
      %51 = vector.load %arg7[%c0_29, %c0_30] : memref<8x1xf32, #tpu.memory_space<vmem>>, vector<8x1xf32>
      tpu.vector_store %arg7[%c0_29, %c0_30], %31 {strides = array<i32>} : memref<8x1xf32, #tpu.memory_space<vmem>>, vector<8x1xf32>,
    } else {
    }
    %c0_i32_3 = arith.constant 0 : i32
    %9 = arith.cmpi eq, %arg2, %c0_i32_3 : i32
    %10 = arith.extui %9 : i1 to i32
    %c0_i32_4 = arith.constant 0 : i32
    %11 = arith.cmpi ne, %10, %c0_i32_4 : i32
    scf.if %11 {
      %c0 = arith.constant 0 : index
      %c0_5 = arith.constant 0 : index
      %12 = vector.load %arg9[%c0, %c0_5] : memref<8x32xf32, #tpu.memory_space<vmem>>, vector<8x32xf32>
      %c0_6 = arith.constant 0 : index
      %c0_7 = arith.constant 0 : index
      %13 = vector.load %arg8[%c0_6, %c0_7] : memref<8x1xf32, #tpu.memory_space<vmem>>, vector<8x1xf32>
      %14 = tpu.reciprocal %13 {approx = true} : vector<8x1xf32> -> vector<8x1xf32>
      %15 = vector.broadcast %14 : vector<8x1xf32> to vector<8x32xf32>
      %16 = arith.mulf %12, %15 : vector<8x32xf32>
      %c0_8 = arith.constant 0 : index
      %c0_9 = arith.constant 0 : index
      %c0_10 = arith.constant 0 : index
      %17 = vector.load %arg6[%c0_8, %c0_9, %c0_10] : memref<1x8x32xf32, #tpu.memory_space<vmem>>, vector<1x8x32xf32>
      %18 = vector.shape_cast %17 : vector<1x8x32xf32> to vector<8x32xf32>
      %19 = vector.shape_cast %16 : vector<8x32xf32> to vector<1x8x32xf32>
      tpu.vector_store %arg6[%c0_8, %c0_9, %c0_10], %19 {strides = array<i32>} : memref<1x8x32xf32, #tpu.memory_space<vmem>>, vector<1x8x32xf32>,
    } else {
    }
    return
  }
  func.func @transform_0(%arg0: i32, %arg1: i32, %arg2: i32) -> (i32, i32, i32) {
    %c0_i32 = arith.constant 0 : i32
    %c0_i32_0 = arith.constant 0 : i32
    return %arg0, %arg1, %c0_i32 : i32, i32, i32
  }
  func.func @transform_1(%arg0: i32, %arg1: i32, %arg2: i32) -> (i32, i32, i32) {
    %c0_i32 = arith.constant 0 : i32
    %c0_i32_0 = arith.constant 0 : i32
    return %arg0, %arg2, %c0_i32 : i32, i32, i32
  }
  func.func @transform_2(%arg0: i32, %arg1: i32, %arg2: i32) -> (i32, i32, i32) {
    %c0_i32 = arith.constant 0 : i32
    %c0_i32_0 = arith.constant 0 : i32
    return %arg0, %arg2, %c0_i32 : i32, i32, i32
  }
  func.func @transform_3(%arg0: i32, %arg1: i32, %arg2: i32) -> (i32, i32, i32) {
    %c0_i32 = arith.constant 0 : i32
    %c0_i32_0 = arith.constant 0 : i32
    return %arg0, %arg1, %c0_i32 : i32, i32, i32
  }
}

</mosaic_0001>

<llo_original>
// kernel: rope_attention_head.3
$region0: #{rope_attention_head.3}
  #allocation0 [shape = 'u32[]', space=smem, size = 0x4, offset = 0x4, fixed_abs, tag = 'smem constant byte address 0x4 - core index']
  #allocation1 [shape = 'u32[72,128]{1,0:T(1,128)}', space=vmem, size = 0x9000, scoped, tag = 'internal scratch']
  #allocation2 [shape = 'f32[8,1]{1,0:T(8,128)}', space=vmem, size = 0x1000, scoped, tag = 'scratch operand']
  #allocation3 [shape = 'f32[8,1]{1,0:T(8,128)}', space=vmem, size = 0x1000, scoped, tag = 'scratch operand']
  #allocation4 [shape = 'f32[8,32]{1,0:T(8,128)}', space=vmem, size = 0x1000, scoped, tag = 'scratch operand']
  %s0 = inlined_call_operand.vmem [shape: f32[2,8,32], index: 0, kind: input, shape index: {}]
  %s1 = inlined_call_operand.vmem [shape: f32[2,8,32], index: 1, kind: input, shape index: {}]
  %s2 = inlined_call_operand.vmem [shape: f32[2,8,32], index: 2, kind: input, shape index: {}]
  %s3 = inlined_call_operand.hbm [shape: f32[2,8,32], index: 3, kind: output, shape index: {}]
  %s4 = sld [smem:[#allocation0]]
  $region57: #{rope_attention_head.3} parent=0
    _
  %s6 = ssub.s32 1, %s4
  %s7 = scalar_select 0, %s6, %s4
  $region1: #{rope_attention_head.3} parent=0
    #allocation5 [shape = 'u8[8192]{0}', space=vmem, size = 0x2000, scoped, tag = 'output window, operand 0']
    #allocation6 [shape = 's32[2]{0}', space=sflag, size = 0x8, scoped, tag = 'scoped memory for rope_attention_head.3']
    %8 = vsyncpa [#allocation6], 0
    %s9 = scalar_lea.sflag [#allocation6], 1
    %10 = vsyncpa %s9, 0
    loop: start=0, step=1, limit=4
    $region2: #{rope_attention_head.3} parent=1 // loop_pre_header
      _
    $region3: #{rope_attention_head.3} parent=1 // loop_header
      %s12 = sphi 0, %s16
      %p13 = scmp.ge.s32.totalorder %s12, 4
      %s19 = sphi 0, %s38
      %s20 = sphi 0, %s34
      %s21 = sphi 0, %s30
      %s22 = sphi 0, %s19
      %s23 = sphi 0, %s20
      %s24 = sphi 0, %s21
      %s25 = sphi 0, %s22
      %s26 = sphi 0, %s23
      %s27 = sphi 0, %s24
      %s43 = sphi 0, %s45
      %s46 = sphi 0, %s43
      %s47 = sphi 0, %s46
      %s63 = sphi 0, %s47
      %s71 = sphi 0, %s73
      %s74 = sphi 0, %s71
      %s75 = sphi 0, %s74
      %s91 = sphi 0, %s75
      %s99 = sphi 0, %s101
      %s102 = sphi 0, %s99
      %s103 = sphi 0, %s102
      %s119 = sphi 0, %s103
      %s127 = sphi 0, %s129
      %s130 = sphi 0, %s127
      %s131 = sphi 0, %s130
      %s147 = sphi 0, %s131
    $region4: #{rope_attention_head.3} parent=1 // loop_header_branch
      %15 = sbr.rel (%p13) target = $region8
    $region5: #{rope_attention_head.3} parent=1 // loop_body
      %s17 = ssub.s32 %s12, 1
      %s18 = ssub.s32 %s12, 2
      %s28 = sadd.s32 1, %s21
      %p29 = scmp.ge.s32.totalorder %s28, 1
      %s30 = scalar_select %p29, 0, %s28
      %s31 = sadd.s32 1, %s20
      %s32 = scalar_select %p29, %s31, %s20
      %p33 = scmp.ge.s32.totalorder %s32, 1
      %s34 = scalar_select %p33, 0, %s32
      %s35 = sadd.s32 1, %s19
      %s36 = scalar_select %p33, %s35, %s19
      %p37 = scmp.ge.s32.totalorder %s36, 2
      %s38 = scalar_select %p37, 0, %s36
      %s39 = ssub.s32 %s19, %s38
      %s40 = ssub.s32 %s20, %s34
      %s41 = sor.u32 %s39, %s40
      %p42 = scmp.eq.s32.totalorder %s41, 0
      %s44 = sadd.s32 %s43, 1
      %s45 = scalar_select %p42, %s43, %s44
      %p48 = pneg %p42
      %p49 = scmp.eq.s32.totalorder %s12, 1
      %p50 = por %p48, %p49
      %p51 = scmp.ne.s32.totalorder %s43, %s46
      %p52 = scmp.eq.s32.totalorder %s12, 0
      %p53 = por %p51, %p52
      %p54 = scmp.ne.s32.totalorder %s43, %s46
      %p55 = scmp.eq.s32.totalorder %s17, 1
      %p56 = por %p54, %p55
      %p57 = scmp.ne.s32.totalorder %s46, %s47
      %p58 = scmp.eq.s32.totalorder %s17, 0
      %p59 = por %p57, %p58
      %p60 = scmp.ne.s32.totalorder %s46, %s47
      %p61 = scmp.eq.s32.totalorder %s18, 1
      %p62 = por %p60, %p61
      %p64 = scmp.ne.s32.totalorder %s47, %s63
      %p65 = scmp.eq.s32.totalorder %s18, 0
      %p66 = por %p64, %p65
      %s67 = ssub.s32 %s19, %s38
      %s68 = ssub.s32 %s21, %s30
      %s69 = sor.u32 %s67, %s68
      %p70 = scmp.eq.s32.totalorder %s69, 0
      %s72 = sadd.s32 %s71, 1
      %s73 = scalar_select %p70, %s71, %s72
      %p76 = pneg %p70
      %p77 = scmp.eq.s32.totalorder %s12, 1
      %p78 = por %p76, %p77
      %p79 = scmp.ne.s32.totalorder %s71, %s74
      %p80 = scmp.eq.s32.totalorder %s12, 0
      %p81 = por %p79, %p80
      %p82 = scmp.ne.s32.totalorder %s71, %s74
      %p83 = scmp.eq.s32.totalorder %s17, 1
      %p84 = por %p82, %p83
      %p85 = scmp.ne.s32.totalorder %s74, %s75
      %p86 = scmp.eq.s32.totalorder %s17, 0
      %p87 = por %p85, %p86
      %p88 = scmp.ne.s32.totalorder %s74, %s75
      %p89 = scmp.eq.s32.totalorder %s18, 1
      %p90 = por %p88, %p89
      %p92 = scmp.ne.s32.totalorder %s75, %s91
      %p93 = scmp.eq.s32.totalorder %s18, 0
      %p94 = por %p92, %p93
      %s95 = ssub.s32 %s19, %s38
      %s96 = ssub.s32 %s21, %s30
      %s97 = sor.u32 %s95, %s96
      %p98 = scmp.eq.s32.totalorder %s97, 0
      %s100 = sadd.s32 %s99, 1
      %s101 = scalar_select %p98, %s99, %s100
      %p104 = pneg %p98
      %p105 = scmp.eq.s32.totalorder %s12, 1
      %p106 = por %p104, %p105
      %p107 = scmp.ne.s32.totalorder %s99, %s102
      %p108 = scmp.eq.s32.totalorder %s12, 0
      %p109 = por %p107, %p108
      %p110 = scmp.ne.s32.totalorder %s99, %s102
      %p111 = scmp.eq.s32.totalorder %s17, 1
      %p112 = por %p110, %p111
      %p113 = scmp.ne.s32.totalorder %s102, %s103
      %p114 = scmp.eq.s32.totalorder %s17, 0
      %p115 = por %p113, %p114
      %p116 = scmp.ne.s32.totalorder %s102, %s103
      %p117 = scmp.eq.s32.totalorder %s18, 1
      %p118 = por %p116, %p117
      %p120 = scmp.ne.s32.totalorder %s103, %s119
      %p121 = scmp.eq.s32.totalorder %s18, 0
      %p122 = por %p120, %p121
      %s123 = ssub.s32 %s19, %s38
      %s124 = ssub.s32 %s20, %s34
      %s125 = sor.u32 %s123, %s124
      %p126 = scmp.eq.s32.totalorder %s125, 0
      %s128 = sadd.s32 %s127, 1
      %s129 = scalar_select %p126, %s127, %s128
      %p132 = pneg %p126
      %p133 = scmp.eq.s32.totalorder %s12, 1
      %p134 = por %p132, %p133
      %p135 = scmp.ne.s32.totalorder %s127, %s130
      %p136 = scmp.eq.s32.totalorder %s12, 0
      %p137 = por %p135, %p136
      %p138 = scmp.ne.s32.totalorder %s127, %s130
      %p139 = scmp.eq.s32.totalorder %s17, 1
      %p140 = por %p138, %p139
      %p141 = scmp.ne.s32.totalorder %s130, %s131
      %p142 = scmp.eq.s32.totalorder %s17, 0
      %p143 = por %p141, %p142
      %p144 = scmp.ne.s32.totalorder %s130, %s131
      %p145 = scmp.eq.s32.totalorder %s18, 1
      %p146 = por %p144, %p145
      %p148 = scmp.ne.s32.totalorder %s131, %s147
      %p149 = scmp.eq.s32.totalorder %s18, 0
      %p150 = por %p148, %p149
      %p151 = scmp.le.s32.totalorder 1, %s12
      %p152 = scmp.lt.s32.totalorder %s12, 3
      %p153 = pnand %p151, %p152
      %p154 = pneg %p153
      // Predicated region
      $region9: #{rope_attention_head.3} parent=5 // pred_check
        _
      $region10: #{rope_attention_head.3} parent=5 // pred_check_branch
        %156 = sbr.rel (%p153) target = $region12
      $region11: #{rope_attention_head.3} parent=5 // pred_region
        %s157 = ssub.s32 %s12, 1
      $region12: #{rope_attention_head.3} parent=5 // pred_fallthru
        _
      %p158 = scmp.lt.s32.totalorder %s12, 2
      // Predicated region
      $region13: #{rope_attention_head.3} parent=5 // pred_check
        %p159 = pneg %p158
      $region14: #{rope_attention_head.3} parent=5 // pred_check_branch
        %161 = sbr.rel (%p159) target = $region16
      $region15: #{rope_attention_head.3} parent=5 // pred_region
        // Predicated region
        $region17: #{rope_attention_head.3} parent=15 // pred_check
          %p162 = pneg %p53
        $region18: #{rope_attention_head.3} parent=15 // pred_check_branch
          %164 = sbr.rel (%p162) target = $region20
        $region19: #{rope_attention_head.3} parent=15 // pred_region
          %p165 = scmp.lt.s32.totalorder %s19, 1
          %s166 = scalar_select %p165, %s19, 1
          %p167 = scmp.lt.s32.totalorder %s20, 0
          %s168 = scalar_select %p167, %s20, 0
          %s169 = sadd.s32 %s168, %s166
          %s170 = smul.addr %s169, 8
          %s171 = scalar_lea.vmem %s0, %s170
        $region20: #{rope_attention_head.3} parent=15 // pred_fallthru
          _
        // Predicated region
        $region21: #{rope_attention_head.3} parent=15 // pred_check
          %p172 = pneg %p81
        $region22: #{rope_attention_head.3} parent=15 // pred_check_branch
          %174 = sbr.rel (%p172) target = $region24
        $region23: #{rope_attention_head.3} parent=15 // pred_region
          %p175 = scmp.lt.s32.totalorder %s19, 1
          %s176 = scalar_select %p175, %s19, 1
          %p177 = scmp.lt.s32.totalorder %s21, 0
          %s178 = scalar_select %p177, %s21, 0
          %s179 = sadd.s32 %s178, %s176
          %s180 = smul.addr %s179, 8
          %s181 = scalar_lea.vmem %s1, %s180
        $region24: #{rope_attention_head.3} parent=15 // pred_fallthru
          _
        // Predicated region
        $region25: #{rope_attention_head.3} parent=15 // pred_check
          %p182 = pneg %p109
        $region26: #{rope_attention_head.3} parent=15 // pred_check_branch
          %184 = sbr.rel (%p182) target = $region28
        $region27: #{rope_attention_head.3} parent=15 // pred_region
          %p185 = scmp.lt.s32.totalorder %s19, 1
          %s186 = scalar_select %p185, %s19, 1
          %p187 = scmp.lt.s32.totalorder %s21, 0
          %s188 = scalar_select %p187, %s21, 0
          %s189 = sadd.s32 %s188, %s186
          %s190 = smul.addr %s189, 8
          %s191 = scalar_lea.vmem %s2, %s190
        $region28: #{rope_attention_head.3} parent=15 // pred_fallthru
          _
      $region16: #{rope_attention_head.3} parent=5 // pred_fallthru
        _
      %p192 = scmp.le.s32.totalorder 1, %s12
      %p193 = scmp.lt.s32.totalorder %s12, 3
      %p194 = pnand %p192, %p193
      %p195 = pneg %p194
      // Predicated region
      $region29: #{rope_attention_head.3} parent=5 // pred_check
        _
      $region30: #{rope_attention_head.3} parent=5 // pred_check_branch
        %197 = sbr.rel (%p194) target = $region32
      $region31: #{rope_attention_head.3} parent=5 // pred_region
        %s198 = ssub.s32 %s12, 1
        %p199 = scmp.lt.s32.totalorder %s22, 1
        %s200 = scalar_select %p199, %s22, 1
        %p201 = scmp.lt.s32.totalorder %s23, 0
        %s202 = scalar_select %p201, %s23, 0
        %s203 = sadd.s32 %s202, %s200
        %s204 = smul.addr %s203, 8
        %s205 = scalar_lea.vmem %s0, %s204
        %p206 = pneg %p59
        %p207 = pneg %p56
        %p208 = scmp.lt.s32.totalorder %s22, 1
        %s209 = scalar_select %p208, %s22, 1
        %p210 = scmp.lt.s32.totalorder %s24, 0
        %s211 = scalar_select %p210, %s24, 0
        %s212 = sadd.s32 %s211, %s209
        %s213 = smul.addr %s212, 8
        %s214 = scalar_lea.vmem %s1, %s213
        %p215 = pneg %p87
        %p216 = pneg %p84
        %p217 = scmp.lt.s32.totalorder %s22, 1
        %s218 = scalar_select %p217, %s22, 1
        %p219 = scmp.lt.s32.totalorder %s24, 0
        %s220 = scalar_select %p219, %s24, 0
        %s221 = sadd.s32 %s220, %s218
        %s222 = smul.addr %s221, 8
        %s223 = scalar_lea.vmem %s2, %s222
        %p224 = pneg %p115
        %p225 = pneg %p112
        %p226 = pneg %p143
        %p227 = pneg %p140
        %s228 = sand.u32 %s130, 1
        %s229 = scalar_lea.sflag [#allocation6], %s228
        %s230 = sand.u32 %s130, 1
        %s231 = smul.addr %s230, 8
        %s232 = scalar_lea.vmem [#allocation5], %s231
        %p233 = scmp.lt.s32.totalorder %s22, 1
        %s234 = scalar_select %p233, %s22, 1
        %p235 = scmp.lt.s32.totalorder %s23, 0
        %s236 = scalar_select %p235, %s23, 0
        %s237 = sadd.s32 %s236, %s234
        %s238 = smul.addr %s237, 8
        %s239 = scalar_lea.vmem %s0, %s238
        %p240 = scmp.lt.s32.totalorder %s22, 1
        %s241 = scalar_select %p240, %s22, 1
        %p242 = scmp.lt.s32.totalorder %s24, 0
        %s243 = scalar_select %p242, %s24, 0
        %s244 = sadd.s32 %s243, %s241
        %s245 = smul.addr %s244, 8
        %s246 = scalar_lea.vmem %s1, %s245
        %p247 = scmp.lt.s32.totalorder %s22, 1
        %s248 = scalar_select %p247, %s22, 1
        %p249 = scmp.lt.s32.totalorder %s24, 0
        %s250 = scalar_select %p249, %s24, 0
        %s251 = sadd.s32 %s250, %s248
        %s252 = smul.addr %s251, 8
        %s253 = scalar_lea.vmem %s2, %s252
        %p254 = scmp.eq.s32.totalorder %s24, 0
        // Predicated region
        $region33: #{rope_attention_head.3} parent=31 // pred_check
          %p255 = pneg %p254
        $region34: #{rope_attention_head.3} parent=31 // pred_check_branch
          %257 = sbr.rel (%p255) target = $region36
        $region35: #{rope_attention_head.3} parent=31 // pred_region
          %vm258 = vcmask 7168
          %259 = vst.msk [vmem:[#allocation2] sm:$0xff] %vm258, -inf
          %260 = vst.msk [vmem:[#allocation3] sm:$0xff] %vm258, 0.0
          %vm261 = vcmask 261120
          %262 = vst.msk [vmem:[#allocation4] sm:$0xff] %vm261, 0.0
        $region36: #{rope_attention_head.3} parent=31 // pred_fallthru
          _
        %s263 = smul.u32 %s24, 8
        %s264 = sadd.s32 %s23, 1
        %s265 = smul.u32 %s264, 8
        %p266 = scmp.lt.s32.totalorder %s263, %s265
        // Predicated region
        $region37: #{rope_attention_head.3} parent=31 // pred_check
          %p267 = pneg %p266
        $region38: #{rope_attention_head.3} parent=31 // pred_check_branch
          %269 = sbr.rel (%p267) target = $region40
        $region39: #{rope_attention_head.3} parent=31 // pred_region
          %v270 = vld [vmem:[%s239] sm:$0xff]
          %v271 = vld [vmem:[%s246] sm:$0xff]
          %vm272 = vcmask 261120
          %v274 = vsel %vm272, %v270, 0
          %v277 = vsel %vm272, %v271, 0
          %279 = vmatpush.xpose.msra.mxu0 0.0
          %280 = vmatpush.xpose.msra.mxu0 0.0
          %281 = vmatpush.xpose.msra.mxu0 0.0
          %282 = vmatpush.xpose.msra.mxu0 0.0
          %283 = vmatpush.xpose.msra.mxu0 0.0
          %284 = vmatpush.xpose.msra.mxu0 0.0
          %285 = vmatpush.xpose.msra.mxu0 0.0
          %286 = vmatpush.xpose.msra.mxu0 0.0
          %287 = vmatpush.xpose.msra.mxu0 0.0
          %288 = vmatpush.xpose.msra.mxu0 0.0
          %289 = vmatpush.xpose.msra.mxu0 0.0
          %290 = vmatpush.xpose.msra.mxu0 0.0
          %291 = vmatpush.xpose.msra.mxu0 0.0
          %292 = vmatpush.xpose.msra.mxu0 0.0
          %293 = vmatpush.xpose.msra.mxu0 0.0
          %294 = vmatpush.xpose.msra.mxu0 %v277
          %295 = vmatmul.f32.gmra.mxu0 %v274
          %v296 = vpop.f32.mrf.mxu0
          %v297 = vadd.f32 0.0, %v296
          %298 = vdwg.mxu0
          %s299 = smul.u32 %s23, 8
          %v300 = vlaneseq
          %v301 = vshrl.u32 %v300, 7
          %v302 = vstv %s299
          %v303 = vadd.s32 %v302, %v301
          %v304 = vlaneseq
          %v305 = vand.u32 %v304, 127
          %v306 = vstv %s263
          %v307 = vadd.s32 %v306, %v305
          %vm308 = vcmp.le.s32.totalorder %v307, %v303
          %v309 = vsel %vm308, %v297, -inf
          %v310 = vld [vmem:[#allocation2] sm:$0xff]
          %vm311 = vcmask 64512
          %v312 = vsel %vm311, %v309, -inf
          %313 = vmax.xlane.f32.xlu0 %v312
          %v314 = vpop.xlane.xlu0 %313
          %v315 = vmax.f32 %v310, %v314
          %v316 = vsub.f32 %v310, %v315
          %v317 = vmul.f32 %v316, 1.442695
          %v318 = vpow.pop %v317
          %320 = vset.pattern.permute.xlu0 0
          %321 = vperm.xlu0 %320, %v315
          %v322 = vpop.permute.xlu0 %321
          %v324 = vsub.f32 %v309, %v322
          %v325 = vmul.f32 %v324, 1.442695
          %v326 = vpow.pop %v325
          %v327 = vld [vmem:[#allocation3] sm:$0xff]
          %v328 = vmul.f32 %v318, %v327
          %v329 = vsel %vm311, %v326, 0.0
          %330 = vadd.xlane.f32.xlu0 %v329
          %v331 = vpop.xlane.xlu0 %330
          %v332 = vadd.f32 %v328, %v331
          %vm333 = vcmask 7168
          %334 = vst.msk [vmem:[#allocation3] sm:$0xff] %vm333, %v332
          %v335 = vld [vmem:[#allocation4] sm:$0xff]
          %337 = vset.pattern.permute.xlu0 0
          %338 = vperm.xlu0 %337, %v318
          %v339 = vpop.permute.xlu0 %338
          %v341 = vmul.f32 %v339, %v335
          %v342 = vld [vmem:[%s253] sm:$0xff]
          %v344 = vsel %vm311, %v326, 0
          %346 = vmatpush.msra.mxu0 0.0
          %347 = vmatpush.msra.mxu0 0.0
          %348 = vmatpush.msra.mxu0 0.0
          %349 = vmatpush.msra.mxu0 0.0
          %350 = vmatpush.msra.mxu0 0.0
          %351 = vmatpush.msra.mxu0 0.0
          %352 = vmatpush.msra.mxu0 0.0
          %353 = vmatpush.msra.mxu0 0.0
          %354 = vmatpush.msra.mxu0 0.0
          %355 = vmatpush.msra.mxu0 0.0
          %356 = vmatpush.msra.mxu0 0.0
          %357 = vmatpush.msra.mxu0 0.0
          %358 = vmatpush.msra.mxu0 0.0
          %359 = vmatpush.msra.mxu0 0.0
          %360 = vmatpush.msra.mxu0 0.0
          %361 = vmatpush.msra.mxu0 %v342
          %362 = vmatmul.f32.gmra.mxu0 %v344
          %v363 = vpop.f32.mrf.mxu0
          %v364 = vadd.f32 0.0, %v363
          %365 = vdwg.mxu0
          %v366 = vadd.f32 %v341, %v364
          %367 = vst.msk [vmem:[#allocation4] sm:$0xff] %vm272, %v366
          %368 = vst.msk [vmem:[#allocation2] sm:$0xff] %vm333, %v315
        $region40: #{rope_attention_head.3} parent=31 // pred_fallthru
          _
        // Predicated region
        $region41: #{rope_attention_head.3} parent=31 // pred_check
          %p369 = pneg %p254
        $region42: #{rope_attention_head.3} parent=31 // pred_check_branch
          %371 = sbr.rel (%p369) target = $region44
        $region43: #{rope_attention_head.3} parent=31 // pred_region
          %v372 = vld [vmem:[#allocation4] sm:$0xff]
          %v373 = vld [vmem:[#allocation3] sm:$0xff]
          %v374 = vrcp.pop %v373
          %376 = vset.pattern.permute.xlu0 0
          %377 = vperm.xlu0 %376, %v374
          %v378 = vpop.permute.xlu0 %377
          %v380 = vmul.f32 %v372, %v378
          %vm381 = vcmask 261120
          %382 = vst.msk [vmem:[%s232] sm:$0xff] %vm381, %v380
        $region44: #{rope_attention_head.3} parent=31 // pred_fallthru
          _
        %s383 = sand.u32 %s130, 1
        %s384 = scalar_lea.sflag [#allocation6], %s383
        %s385 = sand.u32 %s130, 1
        %s386 = smul.addr %s385, 8
        %s387 = scalar_lea.vmem [#allocation5], %s386
        // Predicated region
        $region45: #{rope_attention_head.3} parent=31 // pred_check
          %p388 = pneg %p140
        $region46: #{rope_attention_head.3} parent=31 // pred_check_branch
          %390 = sbr.rel (%p388) target = $region48
        $region47: #{rope_attention_head.3} parent=31 // pred_region
          %392 = vsyncadd %s384, 0
          %s393 = sadd.s32 %s23, %s22
          %s394 = smul.addr %s393, 8
          %s395 = scalar_lea.hbm %s3, %s394
          %s397 = sshll.u32 %s387, 4
          %s398 = int_to_ptr.vmem [resolvable:$true] %s397
          %s399 = sshll.u32 %s395, 4
          %s400 = int_to_ptr.hbm [resolvable:$true] %s399
          %402 = dma.vmem_to_hbm [thread:$0]  %s398, 128, %s400, %s384
        $region48: #{rope_attention_head.3} parent=31 // pred_fallthru
          _
      $region32: #{rope_attention_head.3} parent=5 // pred_fallthru
        _
      %p403 = scmp.le.s32.totalorder 2, %s12
      // Predicated region
      $region49: #{rope_attention_head.3} parent=5 // pred_check
        %p404 = pneg %p403
      $region50: #{rope_attention_head.3} parent=5 // pred_check_branch
        %406 = sbr.rel (%p404) target = $region52
      $region51: #{rope_attention_head.3} parent=5 // pred_region
        %s407 = ssub.s32 %s12, 2
        // Predicated region
        $region53: #{rope_attention_head.3} parent=51 // pred_check
          %p408 = pneg %p146
        $region54: #{rope_attention_head.3} parent=51 // pred_check_branch
          %410 = sbr.rel (%p408) target = $region56
        $region55: #{rope_attention_head.3} parent=51 // pred_region
          %s411 = sand.u32 %s131, 1
          %s412 = scalar_lea.sflag [#allocation6], %s411
          %s413 = sand.u32 %s131, 1
          %s414 = smul.addr %s413, 8
          %s415 = scalar_lea.vmem [#allocation5], %s414
          %417 = dma.done %s412, 128
        $region56: #{rope_attention_head.3} parent=51 // pred_fallthru
          _
      $region52: #{rope_attention_head.3} parent=5 // pred_fallthru
        _
    $region6: #{rope_attention_head.3} parent=1 // loop_footer
      %s16 = sadd.s32 1, %s12
    $region7: #{rope_attention_head.3} parent=1 // loop_footer_branch
      %11 = sbr.rel target = $region3
    $region8: #{rope_attention_head.3} parent=1 // loop_exit
      _
    %418 = vsyncpa [#allocation6], 1
    %s419 = scalar_lea.sflag [#allocation6], 1
    %420 = vsyncpa %s419, 1

// kernel: rope_attention_head.2
$region0: #{rope_attention_head.2}
  #allocation0 [shape = 'u32[]', space=smem, size = 0x4, offset = 0x4, fixed_abs, tag = 'smem constant byte address 0x4 - core index']
  #allocation1 [shape = 'u32[72,128]{1,0:T(1,128)}', space=vmem, size = 0x9000, scoped, tag = 'internal scratch']
  %s0 = inlined_call_operand.vmem [shape: f32[2,8,32], index: 0, kind: input, shape index: {}]
  %s1 = inlined_call_operand.hbm [shape: f32[32,160], index: 1, kind: input, shape index: {}]
  %s2 = inlined_call_operand.vmem [shape: f32[8,32], index: 2, kind: input, shape index: {}]
  %s3 = inlined_call_operand.vmem [shape: f32[8,32], index: 3, kind: input, shape index: {}]
  %s4 = inlined_call_operand.vmem [shape: f32[2,8,32], index: 4, kind: output, shape index: {0}]
  %s5 = inlined_call_operand.vmem [shape: f32[2,8,32], index: 5, kind: output, shape index: {1}]
  %s6 = inlined_call_operand.vmem [shape: f32[2,8,32], index: 6, kind: output, shape index: {2}]
  %7 = xla_tuple %s4, %s5, %s6
  %s8 = sld [smem:[#allocation0]]
  $region69: #{rope_attention_head.2} parent=0
    _
  %s10 = ssub.s32 1, %s8
  %s11 = scalar_select 0, %s10, %s8
  $region1: #{rope_attention_head.2} parent=0
    #allocation2 [shape = 'u8[32768]{0}', space=vmem, size = 0x8000, scoped, tag = 'input window, operand 1, single buffered']
    #allocation3 [shape = 's32[2]{0}', space=sflag, size = 0x8, scoped, tag = 'scoped memory for rope_attention_head.2']
    %12 = vsyncpa [#allocation3], 0
    loop: start=0, step=1, limit=4
    $region2: #{rope_attention_head.2} parent=1 // loop_pre_header
      _
    $region3: #{rope_attention_head.2} parent=1 // loop_header
      %s14 = sphi 0, %s18
      %p15 = scmp.ge.s32.totalorder %s14, 4
      %s21 = sphi 0, %s33
      %s22 = sphi 0, %s29
      %s23 = sphi 0, %s21
      %s24 = sphi 0, %s22
      %s25 = sphi 0, %s23
      %s26 = sphi 0, %s24
      %s38 = sphi 0, %s40
      %s41 = sphi 0, %s38
      %s42 = sphi 0, %s41
      %s58 = sphi 0, %s42
      %s62 = sphi 0, %s62
      %s64 = sphi 0, %s62
      %s65 = sphi 0, %s64
      %s79 = sphi 0, %s65
      %s85 = sphi 0, %s87
      %s88 = sphi 0, %s85
      %s89 = sphi 0, %s88
      %s105 = sphi 0, %s89
      %s111 = sphi 0, %s113
      %s114 = sphi 0, %s111
      %s115 = sphi 0, %s114
      %s131 = sphi 0, %s115
      %s139 = sphi 0, %s141
      %s142 = sphi 0, %s139
      %s143 = sphi 0, %s142
      %s159 = sphi 0, %s143
      %s167 = sphi 0, %s169
      %s170 = sphi 0, %s167
      %s171 = sphi 0, %s170
      %s187 = sphi 0, %s171
      %s195 = sphi 0, %s197
      %s198 = sphi 0, %s195
      %s199 = sphi 0, %s198
      %s215 = sphi 0, %s199
    $region4: #{rope_attention_head.2} parent=1 // loop_header_branch
      %17 = sbr.rel (%p15) target = $region8
    $region5: #{rope_attention_head.2} parent=1 // loop_body
      %s19 = ssub.s32 %s14, 1
      %s20 = ssub.s32 %s14, 2
      %s27 = sadd.s32 1, %s22
      %p28 = scmp.ge.s32.totalorder %s27, 1
      %s29 = scalar_select %p28, 0, %s27
      %s30 = sadd.s32 1, %s21
      %s31 = scalar_select %p28, %s30, %s21
      %p32 = scmp.ge.s32.totalorder %s31, 2
      %s33 = scalar_select %p32, 0, %s31
      %s34 = ssub.s32 %s21, %s33
      %s35 = ssub.s32 %s22, %s29
      %s36 = sor.u32 %s34, %s35
      %p37 = scmp.eq.s32.totalorder %s36, 0
      %s39 = sadd.s32 %s38, 1
      %s40 = scalar_select %p37, %s38, %s39
      %p43 = pneg %p37
      %p44 = scmp.eq.s32.totalorder %s14, 1
      %p45 = por %p43, %p44
      %p46 = scmp.ne.s32.totalorder %s38, %s41
      %p47 = scmp.eq.s32.totalorder %s14, 0
      %p48 = por %p46, %p47
      %p49 = scmp.ne.s32.totalorder %s38, %s41
      %p50 = scmp.eq.s32.totalorder %s19, 1
      %p51 = por %p49, %p50
      %p52 = scmp.ne.s32.totalorder %s41, %s42
      %p53 = scmp.eq.s32.totalorder %s19, 0
      %p54 = por %p52, %p53
      %p55 = scmp.ne.s32.totalorder %s41, %s42
      %p56 = scmp.eq.s32.totalorder %s20, 1
      %p57 = por %p55, %p56
      %p59 = scmp.ne.s32.totalorder %s42, %s58
      %p60 = scmp.eq.s32.totalorder %s20, 0
      %p61 = por %p59, %p60
      %s63 = sadd.s32 %s62, 1
      %p66 = scmp.eq.s32.totalorder %s14, 1
      %p67 = scmp.ne.s32.totalorder %s62, %s64
      %p68 = scmp.eq.s32.totalorder %s14, 0
      %p69 = por %p67, %p68
      %p70 = scmp.ne.s32.totalorder %s62, %s64
      %p71 = scmp.eq.s32.totalorder %s19, 1
      %p72 = por %p70, %p71
      %p73 = scmp.ne.s32.totalorder %s64, %s65
      %p74 = scmp.eq.s32.totalorder %s19, 0
      %p75 = por %p73, %p74
      %p76 = scmp.ne.s32.totalorder %s64, %s65
      %p77 = scmp.eq.s32.totalorder %s20, 1
      %p78 = por %p76, %p77
      %p80 = scmp.ne.s32.totalorder %s65, %s79
      %p81 = scmp.eq.s32.totalorder %s20, 0
      %p82 = por %p80, %p81
      %s83 = ssub.s32 %s22, %s29
      %p84 = scmp.eq.s32.totalorder %s83, 0
      %s86 = sadd.s32 %s85, 1
      %s87 = scalar_select %p84, %s85, %s86
      %p90 = pneg %p84
      %p91 = scmp.eq.s32.totalorder %s14, 1
      %p92 = por %p90, %p91
      %p93 = scmp.ne.s32.totalorder %s85, %s88
      %p94 = scmp.eq.s32.totalorder %s14, 0
      %p95 = por %p93, %p94
      %p96 = scmp.ne.s32.totalorder %s85, %s88
      %p97 = scmp.eq.s32.totalorder %s19, 1
      %p98 = por %p96, %p97
      %p99 = scmp.ne.s32.totalorder %s88, %s89
      %p100 = scmp.eq.s32.totalorder %s19, 0
      %p101 = por %p99, %p100
      %p102 = scmp.ne.s32.totalorder %s88, %s89
      %p103 = scmp.eq.s32.totalorder %s20, 1
      %p104 = por %p102, %p103
      %p106 = scmp.ne.s32.totalorder %s89, %s105
      %p107 = scmp.eq.s32.totalorder %s20, 0
      %p108 = por %p106, %p107
      %s109 = ssub.s32 %s22, %s29
      %p110 = scmp.eq.s32.totalorder %s109, 0
      %s112 = sadd.s32 %s111, 1
      %s113 = scalar_select %p110, %s111, %s112
      %p116 = pneg %p110
      %p117 = scmp.eq.s32.totalorder %s14, 1
      %p118 = por %p116, %p117
      %p119 = scmp.ne.s32.totalorder %s111, %s114
      %p120 = scmp.eq.s32.totalorder %s14, 0
      %p121 = por %p119, %p120
      %p122 = scmp.ne.s32.totalorder %s111, %s114
      %p123 = scmp.eq.s32.totalorder %s19, 1
      %p124 = por %p122, %p123
      %p125 = scmp.ne.s32.totalorder %s114, %s115
      %p126 = scmp.eq.s32.totalorder %s19, 0
      %p127 = por %p125, %p126
      %p128 = scmp.ne.s32.totalorder %s114, %s115
      %p129 = scmp.eq.s32.totalorder %s20, 1
      %p130 = por %p128, %p129
      %p132 = scmp.ne.s32.totalorder %s115, %s131
      %p133 = scmp.eq.s32.totalorder %s20, 0
      %p134 = por %p132, %p133
      %s135 = ssub.s32 %s21, %s33
      %s136 = ssub.s32 %s22, %s29
      %s137 = sor.u32 %s135, %s136
      %p138 = scmp.eq.s32.totalorder %s137, 0
      %s140 = sadd.s32 %s139, 1
      %s141 = scalar_select %p138, %s139, %s140
      %p144 = pneg %p138
      %p145 = scmp.eq.s32.totalorder %s14, 1
      %p146 = por %p144, %p145
      %p147 = scmp.ne.s32.totalorder %s139, %s142
      %p148 = scmp.eq.s32.totalorder %s14, 0
      %p149 = por %p147, %p148
      %p150 = scmp.ne.s32.totalorder %s139, %s142
      %p151 = scmp.eq.s32.totalorder %s19, 1
      %p152 = por %p150, %p151
      %p153 = scmp.ne.s32.totalorder %s142, %s143
      %p154 = scmp.eq.s32.totalorder %s19, 0
      %p155 = por %p153, %p154
      %p156 = scmp.ne.s32.totalorder %s142, %s143
      %p157 = scmp.eq.s32.totalorder %s20, 1
      %p158 = por %p156, %p157
      %p160 = scmp.ne.s32.totalorder %s143, %s159
      %p161 = scmp.eq.s32.totalorder %s20, 0
      %p162 = por %p160, %p161
      %s163 = ssub.s32 %s21, %s33
      %s164 = ssub.s32 %s22, %s29
      %s165 = sor.u32 %s163, %s164
      %p166 = scmp.eq.s32.totalorder %s165, 0
      %s168 = sadd.s32 %s167, 1
      %s169 = scalar_select %p166, %s167, %s168
      %p172 = pneg %p166
      %p173 = scmp.eq.s32.totalorder %s14, 1
      %p174 = por %p172, %p173
      %p175 = scmp.ne.s32.totalorder %s167, %s170
      %p176 = scmp.eq.s32.totalorder %s14, 0
      %p177 = por %p175, %p176
      %p178 = scmp.ne.s32.totalorder %s167, %s170
      %p179 = scmp.eq.s32.totalorder %s19, 1
      %p180 = por %p178, %p179
      %p181 = scmp.ne.s32.totalorder %s170, %s171
      %p182 = scmp.eq.s32.totalorder %s19, 0
      %p183 = por %p181, %p182
      %p184 = scmp.ne.s32.totalorder %s170, %s171
      %p185 = scmp.eq.s32.totalorder %s20, 1
      %p186 = por %p184, %p185
      %p188 = scmp.ne.s32.totalorder %s171, %s187
      %p189 = scmp.eq.s32.totalorder %s20, 0
      %p190 = por %p188, %p189
      %s191 = ssub.s32 %s21, %s33
      %s192 = ssub.s32 %s22, %s29
      %s193 = sor.u32 %s191, %s192
      %p194 = scmp.eq.s32.totalorder %s193, 0
      %s196 = sadd.s32 %s195, 1
      %s197 = scalar_select %p194, %s195, %s196
      %p200 = pneg %p194
      %p201 = scmp.eq.s32.totalorder %s14, 1
      %p202 = por %p200, %p201
      %p203 = scmp.ne.s32.totalorder %s195, %s198
      %p204 = scmp.eq.s32.totalorder %s14, 0
      %p205 = por %p203, %p204
      %p206 = scmp.ne.s32.totalorder %s195, %s198
      %p207 = scmp.eq.s32.totalorder %s19, 1
      %p208 = por %p206, %p207
      %p209 = scmp.ne.s32.totalorder %s198, %s199
      %p210 = scmp.eq.s32.totalorder %s19, 0
      %p211 = por %p209, %p210
      %p212 = scmp.ne.s32.totalorder %s198, %s199
      %p213 = scmp.eq.s32.totalorder %s20, 1
      %p214 = por %p212, %p213
      %p216 = scmp.ne.s32.totalorder %s199, %s215
      %p217 = scmp.eq.s32.totalorder %s20, 0
      %p218 = por %p216, %p217
      %p219 = scmp.le.s32.totalorder 1, %s14
      %p220 = scmp.lt.s32.totalorder %s14, 3
      %p221 = pnand %p219, %p220
      %p222 = pneg %p221
      // Predicated region
      $region9: #{rope_attention_head.2} parent=5 // pred_check
        _
      $region10: #{rope_attention_head.2} parent=5 // pred_check_branch
        %224 = sbr.rel (%p221) target = $region12
      $region11: #{rope_attention_head.2} parent=5 // pred_region
        %s225 = ssub.s32 %s14, 1
        // Predicated region
        $region13: #{rope_attention_head.2} parent=11 // pred_check
          %p226 = pneg %p75
        $region14: #{rope_attention_head.2} parent=11 // pred_check_branch
          %228 = sbr.rel (%p226) target = $region16
        $region15: #{rope_attention_head.2} parent=11 // pred_region
          %230 = vsyncadd [#allocation3], 0
          %s231 = sshll.u32 %s1, 4
          %s232 = int_to_ptr.hbm [resolvable:$true] %s231
          %s233 = sshll.u32 [#allocation2], 4
          %s234 = int_to_ptr.vmem [resolvable:$true] %s233
          %239 = dma.hbm_to_vmem [thread:$0]  %s232, 1024, %s234, [#allocation3], 256, 256, 16
        $region16: #{rope_attention_head.2} parent=11 // pred_fallthru
          _
        // Predicated region
        $region17: #{rope_attention_head.2} parent=11 // pred_check
          %p240 = pneg %p101
        $region18: #{rope_attention_head.2} parent=11 // pred_check_branch
          %242 = sbr.rel (%p240) target = $region20
        $region19: #{rope_attention_head.2} parent=11 // pred_region
          %p243 = scmp.lt.s32.totalorder %s24, 0
          %s244 = scalar_select %p243, %s24, 0
          %s245 = smul.addr %s244, 8
          %s246 = scalar_lea.vmem %s2, %s245
        $region20: #{rope_attention_head.2} parent=11 // pred_fallthru
          _
        // Predicated region
        $region21: #{rope_attention_head.2} parent=11 // pred_check
          %p247 = pneg %p127
        $region22: #{rope_attention_head.2} parent=11 // pred_check_branch
          %249 = sbr.rel (%p247) target = $region24
        $region23: #{rope_attention_head.2} parent=11 // pred_region
          %p250 = scmp.lt.s32.totalorder %s24, 0
          %s251 = scalar_select %p250, %s24, 0
          %s252 = smul.addr %s251, 8
          %s253 = scalar_lea.vmem %s3, %s252
        $region24: #{rope_attention_head.2} parent=11 // pred_fallthru
          _
      $region12: #{rope_attention_head.2} parent=5 // pred_fallthru
        _
      %p254 = scmp.lt.s32.totalorder %s14, 2
      // Predicated region
      $region25: #{rope_attention_head.2} parent=5 // pred_check
        %p255 = pneg %p254
      $region26: #{rope_attention_head.2} parent=5 // pred_check_branch
        %257 = sbr.rel (%p255) target = $region28
      $region27: #{rope_attention_head.2} parent=5 // pred_region
        // Predicated region
        $region29: #{rope_attention_head.2} parent=27 // pred_check
          %p258 = pneg %p48
        $region30: #{rope_attention_head.2} parent=27 // pred_check_branch
          %260 = sbr.rel (%p258) target = $region32
        $region31: #{rope_attention_head.2} parent=27 // pred_region
          %p261 = scmp.lt.s32.totalorder %s21, 1
          %s262 = scalar_select %p261, %s21, 1
          %p263 = scmp.lt.s32.totalorder %s22, 0
          %s264 = scalar_select %p263, %s22, 0
          %s265 = sadd.s32 %s264, %s262
          %s266 = smul.addr %s265, 8
          %s267 = scalar_lea.vmem %s0, %s266
        $region32: #{rope_attention_head.2} parent=27 // pred_fallthru
          _
      $region28: #{rope_attention_head.2} parent=5 // pred_fallthru
        _
      %p268 = scmp.le.s32.totalorder 1, %s14
      %p269 = scmp.lt.s32.totalorder %s14, 3
      %p270 = pnand %p268, %p269
      %p271 = pneg %p270
      // Predicated region
      $region33: #{rope_attention_head.2} parent=5 // pred_check
        _
      $region34: #{rope_attention_head.2} parent=5 // pred_check_branch
        %273 = sbr.rel (%p270) target = $region36
      $region35: #{rope_attention_head.2} parent=5 // pred_region
        %s274 = ssub.s32 %s14, 1
        // Predicated region
        $region37: #{rope_attention_head.2} parent=35 // pred_check
          %p275 = pneg %p75
        $region38: #{rope_attention_head.2} parent=35 // pred_check_branch
          %277 = sbr.rel (%p275) target = $region40
        $region39: #{rope_attention_head.2} parent=35 // pred_region
          %279 = dma.done [#allocation3], 1024
        $region40: #{rope_attention_head.2} parent=35 // pred_fallthru
          _
        %p280 = scmp.lt.s32.totalorder %s23, 1
        %s281 = scalar_select %p280, %s23, 1
        %p282 = scmp.lt.s32.totalorder %s24, 0
        %s283 = scalar_select %p282, %s24, 0
        %s284 = sadd.s32 %s283, %s281
        %s285 = smul.addr %s284, 8
        %s286 = scalar_lea.vmem %s0, %s285
        %p287 = pneg %p54
        %p288 = pneg %p51
        %p289 = pneg %p75
        %p290 = pneg %p72
        %p291 = scmp.lt.s32.totalorder %s24, 0
        %s292 = scalar_select %p291, %s24, 0
        %s293 = smul.addr %s292, 8
        %s294 = scalar_lea.vmem %s2, %s293
        %p295 = pneg %p101
        %p296 = pneg %p98
        %p297 = scmp.lt.s32.totalorder %s24, 0
        %s298 = scalar_select %p297, %s24, 0
        %s299 = smul.addr %s298, 8
        %s300 = scalar_lea.vmem %s3, %s299
        %p301 = pneg %p127
        %p302 = pneg %p124
        %p303 = pneg %p155
        %p304 = pneg %p152
        %p305 = scmp.lt.s32.totalorder %s23, 1
        %s306 = scalar_select %p305, %s23, 1
        %p307 = scmp.lt.s32.totalorder %s24, 0
        %s308 = scalar_select %p307, %s24, 0
        %s309 = sadd.s32 %s308, %s306
        %s310 = smul.addr %s309, 8
        %s311 = scalar_lea.vmem %s4, %s310
        %p312 = pneg %p183
        %p313 = pneg %p180
        %p314 = scmp.lt.s32.totalorder %s23, 1
        %s315 = scalar_select %p314, %s23, 1
        %p316 = scmp.lt.s32.totalorder %s24, 0
        %s317 = scalar_select %p316, %s24, 0
        %s318 = sadd.s32 %s317, %s315
        %s319 = smul.addr %s318, 8
        %s320 = scalar_lea.vmem %s5, %s319
        %p321 = pneg %p211
        %p322 = pneg %p208
        %p323 = scmp.lt.s32.totalorder %s23, 1
        %s324 = scalar_select %p323, %s23, 1
        %p325 = scmp.lt.s32.totalorder %s24, 0
        %s326 = scalar_select %p325, %s24, 0
        %s327 = sadd.s32 %s326, %s324
        %s328 = smul.addr %s327, 8
        %s329 = scalar_lea.vmem %s6, %s328
        %p330 = scmp.lt.s32.totalorder %s23, 1
        %s331 = scalar_select %p330, %s23, 1
        %p332 = scmp.lt.s32.totalorder %s24, 0
        %s333 = scalar_select %p332, %s24, 0
        %s334 = sadd.s32 %s333, %s331
        %s335 = smul.addr %s334, 8
        %s336 = scalar_lea.vmem %s0, %s335
        %p337 = scmp.lt.s32.totalorder %s24, 0
        %s338 = scalar_select %p337, %s24, 0
        %s339 = smul.addr %s338, 8
        %s340 = scalar_lea.vmem %s2, %s339
        %p341 = scmp.lt.s32.totalorder %s24, 0
        %s342 = scalar_select %p341, %s24, 0
        %s343 = smul.addr %s342, 8
        %s344 = scalar_lea.vmem %s3, %s343
        %p345 = scmp.lt.s32.totalorder %s23, 1
        %s346 = scalar_select %p345, %s23, 1
        %p347 = scmp.lt.s32.totalorder %s24, 0
        %s348 = scalar_select %p347, %s24, 0
        %s349 = sadd.s32 %s348, %s346
        %s350 = smul.addr %s349, 8
        %s351 = scalar_lea.vmem %s4, %s350
        %p352 = scmp.lt.s32.totalorder %s23, 1
        %s353 = scalar_select %p352, %s23, 1
        %p354 = scmp.lt.s32.totalorder %s24, 0
        %s355 = scalar_select %p354, %s24, 0
        %s356 = sadd.s32 %s355, %s353
        %s357 = smul.addr %s356, 8
        %s358 = scalar_lea.vmem %s5, %s357
        %p359 = scmp.lt.s32.totalorder %s23, 1
        %s360 = scalar_select %p359, %s23, 1
        %p361 = scmp.lt.s32.totalorder %s24, 0
        %s362 = scalar_select %p361, %s24, 0
        %s363 = sadd.s32 %s362, %s360
        %s364 = smul.addr %s363, 8
        %s365 = scalar_lea.vmem %s6, %s364
        %v366 = vld [vmem:[%s336] sm:$0xff]
        %v367 = vld [vmem:[#allocation2] sm:$0xff]
        %v368 = vld [vmem:[#allocation2 + $0x8] sm:$0xff]
        %v369 = vld [vmem:[#allocation2 + $0x10] sm:$0xff]
        %v370 = vld [vmem:[#allocation2 + $0x18] sm:$0xff]
        %v371 = vld [vmem:[#allocation2 + $0x20] sm:$0xff]
        %v372 = vld [vmem:[#allocation2 + $0x28] sm:$0xff]
        %v373 = vld [vmem:[#allocation2 + $0x30] sm:$0xff]
        %v374 = vld [vmem:[#allocation2 + $0x38] sm:$0xff]
        %vm375 = vcmask 261120
        %v377 = vsel %vm375, %v366, 0
        %379 = vmatpush.msra.mxu0 0.0
        %380 = vmatpush.msra.mxu0 0.0
        %381 = vmatpush.msra.mxu0 0.0
        %382 = vmatpush.msra.mxu0 0.0
        %383 = vmatpush.msra.mxu0 0.0
        %384 = vmatpush.msra.mxu0 0.0
        %385 = vmatpush.msra.mxu0 0.0
        %386 = vmatpush.msra.mxu0 0.0
        %387 = vmatpush.msra.mxu0 0.0
        %388 = vmatpush.msra.mxu0 0.0
        %389 = vmatpush.msra.mxu0 0.0
        %390 = vmatpush.msra.mxu0 0.0
        %391 = vmatpush.msra.mxu0 %v373
        %392 = vmatpush.msra.mxu0 %v371
        %393 = vmatpush.msra.mxu0 %v369
        %394 = vmatpush.msra.mxu0 %v367
        %395 = vmatmul.f32.gmra.mxu0 %v377
        %v396 = vpop.f32.mrf.mxu0
        %v397 = vadd.f32 0.0, %v396
        %398 = vdwg.mxu0
        %399 = vmatpush.msra.mxu0 0.0
        %400 = vmatpush.msra.mxu0 0.0
        %401 = vmatpush.msra.mxu0 0.0
        %402 = vmatpush.msra.mxu0 0.0
        %403 = vmatpush.msra.mxu0 0.0
        %404 = vmatpush.msra.mxu0 0.0
        %405 = vmatpush.msra.mxu0 0.0
        %406 = vmatpush.msra.mxu0 0.0
        %407 = vmatpush.msra.mxu0 0.0
        %408 = vmatpush.msra.mxu0 0.0
        %409 = vmatpush.msra.mxu0 0.0
        %410 = vmatpush.msra.mxu0 0.0
        %411 = vmatpush.msra.mxu0 %v374
        %412 = vmatpush.msra.mxu0 %v372
        %413 = vmatpush.msra.mxu0 %v370
        %414 = vmatpush.msra.mxu0 %v368
        %415 = vmatmul.f32.gmra.mxu0 %v377
        %v416 = vpop.f32.mrf.mxu0
        %v417 = vadd.f32 0.0, %v416
        %418 = vdwg.mxu0
        %v419 = vld [vmem:[%s340] sm:$0xff]
        %v420 = vld [vmem:[%s344] sm:$0xff]
        %v421 = vmul.f32 %v397, %v419
        %423 = vrot.lane.b32.xlu0 %v420, 96
        %v424 = vpop.permute.xlu0 %423
        %v426 = vmul.f32 %v397, %v424
        %428 = vrot.lane.b32.xlu0 %v426, 32
        %v429 = vpop.permute.xlu0 %428
        %v431 = vadd.f32 %v421, %v429
        %v432 = vmul.f32 %v431, 0.17677669
        %433 = vst.msk [vmem:[%s351] sm:$0xff] %vm375, %v432
        %435 = vrot.lane.b32.xlu0 %v419, 32
        %v436 = vpop.permute.xlu0 %435
        %v438 = vmul.f32 %v397, %v436
        %v439 = vmul.f32 %v417, %v420
        %441 = vrot.lane.b32.xlu0 %v439, 32
        %v442 = vpop.permute.xlu0 %441
        %v444 = vadd.f32 %v438, %v442
        %446 = vrot.lane.b32.xlu0 %v444, 96
        %v447 = vpop.permute.xlu0 %446
        %449 = vst.msk [vmem:[%s358] sm:$0xff] %vm375, %v447
        %451 = vrot.lane.b32.xlu0 %v397, 64
        %v452 = vpop.permute.xlu0 %451
        %454 = vst.msk [vmem:[%s365] sm:$0xff] %vm375, %v452
        %p455 = scmp.lt.s32.totalorder %s23, 1
        %s456 = scalar_select %p455, %s23, 1
        %p457 = scmp.lt.s32.totalorder %s24, 0
        %s458 = scalar_select %p457, %s24, 0
        %s459 = sadd.s32 %s458, %s456
        %s460 = smul.addr %s459, 8
        %s461 = scalar_lea.vmem %s4, %s460
        %p462 = scmp.lt.s32.totalorder %s23, 1
        %s463 = scalar_select %p462, %s23, 1
        %p464 = scmp.lt.s32.totalorder %s24, 0
        %s465 = scalar_select %p464, %s24, 0
        %s466 = sadd.s32 %s465, %s463
        %s467 = smul.addr %s466, 8
        %s468 = scalar_lea.vmem %s5, %s467
        %p469 = scmp.lt.s32.totalorder %s23, 1
        %s470 = scalar_select %p469, %s23, 1
        %p471 = scmp.lt.s32.totalorder %s24, 0
        %s472 = scalar_select %p471, %s24, 0
        %s473 = sadd.s32 %s472, %s470
        %s474 = smul.addr %s473, 8
        %s475 = scalar_lea.vmem %s6, %s474
        // Predicated region
        $region41: #{rope_attention_head.2} parent=35 // pred_check
          %p476 = pneg %p152
        $region42: #{rope_attention_head.2} parent=35 // pred_check_branch
          %478 = sbr.rel (%p476) target = $region44
        $region43: #{rope_attention_head.2} parent=35 // pred_region
          _
        $region44: #{rope_attention_head.2} parent=35 // pred_fallthru
          _
        // Predicated region
        $region45: #{rope_attention_head.2} parent=35 // pred_check
          %p479 = pneg %p180
        $region46: #{rope_attention_head.2} parent=35 // pred_check_branch
          %481 = sbr.rel (%p479) target = $region48
        $region47: #{rope_attention_head.2} parent=35 // pred_region
          _
        $region48: #{rope_attention_head.2} parent=35 // pred_fallthru
          _
        // Predicated region
        $region49: #{rope_attention_head.2} parent=35 // pred_check
          %p482 = pneg %p208
        $region50: #{rope_attention_head.2} parent=35 // pred_check_branch
          %484 = sbr.rel (%p482) target = $region52
        $region51: #{rope_attention_head.2} parent=35 // pred_region
          _
        $region52: #{rope_attention_head.2} parent=35 // pred_fallthru
          _
      $region36: #{rope_attention_head.2} parent=5 // pred_fallthru
        _
      %p485 = scmp.le.s32.totalorder 2, %s14
      // Predicated region
      $region53: #{rope_attention_head.2} parent=5 // pred_check
        %p486 = pneg %p485
      $region54: #{rope_attention_head.2} parent=5 // pred_check_branch
        %488 = sbr.rel (%p486) target = $region56
      $region55: #{rope_attention_head.2} parent=5 // pred_region
        %s489 = ssub.s32 %s14, 2
        // Predicated region
        $region57: #{rope_attention_head.2} parent=55 // pred_check
          %p490 = pneg %p158
        $region58: #{rope_attention_head.2} parent=55 // pred_check_branch
          %492 = sbr.rel (%p490) target = $region60
        $region59: #{rope_attention_head.2} parent=55 // pred_region
          %p493 = scmp.lt.s32.totalorder %s25, 1
          %s494 = scalar_select %p493, %s25, 1
          %p495 = scmp.lt.s32.totalorder %s26, 0
          %s496 = scalar_select %p495, %s26, 0
          %s497 = sadd.s32 %s496, %s494
          %s498 = smul.addr %s497, 8
          %s499 = scalar_lea.vmem %s4, %s498
        $region60: #{rope_attention_head.2} parent=55 // pred_fallthru
          _
        // Predicated region
        $region61: #{rope_attention_head.2} parent=55 // pred_check
          %p500 = pneg %p186
        $region62: #{rope_attention_head.2} parent=55 // pred_check_branch
          %502 = sbr.rel (%p500) target = $region64
        $region63: #{rope_attention_head.2} parent=55 // pred_region
          %p503 = scmp.lt.s32.totalorder %s25, 1
          %s504 = scalar_select %p503, %s25, 1
          %p505 = scmp.lt.s32.totalorder %s26, 0
          %s506 = scalar_select %p505, %s26, 0
          %s507 = sadd.s32 %s506, %s504
          %s508 = smul.addr %s507, 8
          %s509 = scalar_lea.vmem %s5, %s508
        $region64: #{rope_attention_head.2} parent=55 // pred_fallthru
          _
        // Predicated region
        $region65: #{rope_attention_head.2} parent=55 // pred_check
          %p510 = pneg %p214
        $region66: #{rope_attention_head.2} parent=55 // pred_check_branch
          %512 = sbr.rel (%p510) target = $region68
        $region67: #{rope_attention_head.2} parent=55 // pred_region
          %p513 = scmp.lt.s32.totalorder %s25, 1
          %s514 = scalar_select %p513, %s25, 1
          %p515 = scmp.lt.s32.totalorder %s26, 0
          %s516 = scalar_select %p515, %s26, 0
          %s517 = sadd.s32 %s516, %s514
          %s518 = smul.addr %s517, 8
          %s519 = scalar_lea.vmem %s6, %s518
        $region68: #{rope_attention_head.2} parent=55 // pred_fallthru
          _
      $region56: #{rope_attention_head.2} parent=5 // pred_fallthru
        _
    $region6: #{rope_attention_head.2} parent=1 // loop_footer
      %s18 = sadd.s32 1, %s14
    $region7: #{rope_attention_head.2} parent=1 // loop_footer_branch
      %13 = sbr.rel target = $region3
    $region8: #{rope_attention_head.2} parent=1 // loop_exit
      _
    %520 = vsyncpa [#allocation3], 1
    %s521 = scalar_lea.sflag [#allocation3], 1
    %522 = vsyncpa %s521, 1

</llo_original>
